<compile_context>
chip_gen: v6e
topology: v6e:2x2x1
jax: 0.10.0
libtpu: 0.0.40
codegen_flags: <defaults>
</compile_context>

<pallas_src>
import jax
import jax.numpy as jnp
from jax.experimental import pallas as pl
from jax.experimental.pallas import tpu as pltpu

# ----------------------------- sizes (small, consistent with the config) ----
B = 2      # batch of (db_id, table) pairs
R = 16     # padded table rows (anchor_table length)
E = 128    # encoder_hidden_size (config: 384; scaled down)
D = 256    # decoder_hidden_size (config: 4096; scaled down)
M = 8      # number of learnable embedding tokens


# ----------------------------- fused kernel ---------------------------------
def _fused_kernel(a_ref, x_ref, w_ref, b_ref, o_ref):
    # a: (B+M, B*R+M)  block-diag normalized-mask rows + identity rows
    # x: (B*R+M, E)    stacked [table rows ; learnable embedding rows]
    # w: (E, tn)       D-tile of the projection weight (= torch weight.T tile)
    # b: (1, tn)       D-tile of the bias
    # o: (B+M, tn)
    # Pooling + row selection as a matmul (MXU; no transpose / XLU reduce).
    rows = jnp.dot(a_ref[...], x_ref[...],
                   preferred_element_type=jnp.float32)          # (B+M, E)
    out = jnp.dot(rows, w_ref[...],
                  preferred_element_type=jnp.float32)           # (B+M, tn)
    o_ref[...] = (out + b_ref[...]).astype(o_ref.dtype)


def fused_encode_and_project(table_embeds, table_masks, learnable_embedding,
                             proj_w, proj_b, *, tn=128):
    """Single pallas_call producing (encoded_tables (B,D), projected_lrn (M,D)).

    The weight is streamed once; D is tiled so the pattern scales to the real
    config (E=384, D=4096) without exceeding scoped-VMEM limits.
    """
    bsz, rows, e = table_embeds.shape
    m = learnable_embedding.shape[0]
    _, d = proj_w.shape
    tn = min(tn, d)
    assert d % tn == 0, "decoder hidden size must be a multiple of the D tile"
    dt = table_embeds.dtype

    # ----- wrapper-side layout plumbing (tiny tensors, no heavy compute) -----
    # precomputed reciprocal: removes the in-kernel XLU reduction + divide
    denom = table_masks.sum(axis=1, keepdims=True) + jnp.asarray(1e-6, dt)
    norm_mask = (table_masks / denom).astype(dt)                 # (B, R)

    # A = [ block-diag(norm_mask)  0 ]      -> masked-mean pool of each table
    #     [ 0                      I ]      -> exact passthrough of learnable
    pool = (jnp.eye(bsz, dtype=dt)[:, :, None]
            * norm_mask[:, None, :]).reshape(bsz, bsz * rows)
    a_top = jnp.concatenate([pool, jnp.zeros((bsz, m), dt)], axis=1)
    a_bot = jnp.concatenate([jnp.zeros((m, bsz * rows), dt),
                             jnp.eye(m, dtype=dt)], axis=1)
    a_mat = jnp.concatenate([a_top, a_bot], axis=0)              # (B+M, B*R+M)

    x_rows = jnp.concatenate([table_embeds.reshape(bsz * rows, e),
                              learnable_embedding], axis=0)      # (B*R+M, E)

    n_out = bsz + m
    n_in = bsz * rows + m

    out = pl.pallas_call(
        _fused_kernel,
        out_shape=jax.ShapeDtypeStruct((n_out, d), dt),
        grid=(d // tn,),
        in_specs=[
            pl.BlockSpec((n_out, n_in), lambda j: (0, 0)),   # resident across D tiles
            pl.BlockSpec((n_in, e), lambda j: (0, 0)),       # resident across D tiles
            pl.BlockSpec((e, tn), lambda j: (0, j)),         # streamed once per D tile
            pl.BlockSpec((1, tn), lambda j: (0, j)),
        ],
        out_specs=pl.BlockSpec((n_out, tn), lambda j: (0, j)),  # lane-dense stores
        compiler_params=pltpu.CompilerParams(
            dimension_semantics=("parallel",)),              # v7x: split D tiles over TCs
    )(a_mat, x_rows, proj_w, proj_b)

    return out[:bsz], out[bsz:]


# ----------------------------- pure-JAX references for sanity check ---------
def _ref_project(x, w, b):
    return x @ w + b


def _ref_encode(x, m, w, b):
    pooled = (x * m[:, :, None]).sum(axis=1) / (m.sum(axis=1, keepdims=True) + 1e-6)
    return pooled @ w + b


# ----------------------------- forward (Model.forward analogue) -------------
@jax.jit
def model_forward(table_embeds, table_masks, learnable_embedding,
                  proj_w, proj_b):
    # self.encoder(...) stand-in + self.learnable_embedding_projector(...)
    # fused into one kernel (single weight DMA, single batched matmul).
    encoded_tables, projected_learnable = fused_encode_and_project(
        table_embeds, table_masks, learnable_embedding, proj_w, proj_b)
    # TODO(synk): self.decoder.forward(...) is an external causal LM and the
    # tokenizer/SentenceTransformer/get_embedded_table file I/O are external
    # checkpoints; we return the two tensors the decoder consumes.
    return encoded_tables, projected_learnable


if __name__ == "__main__":
    key = jax.random.PRNGKey(0)
    k1, k2, k3, k4 = jax.random.split(key, 4)

    # deterministic parameter / input init
    table_embeds = jax.random.normal(k1, (B, R, E), dtype=jnp.float32)
    # binary mask: first half of rows valid for sample 0, all rows for sample 1
    table_masks = jnp.stack([
        jnp.concatenate([jnp.ones((R // 2,)), jnp.zeros((R - R // 2,))]),
        jnp.ones((R,)),
    ]).astype(jnp.float32)
    learnable_embedding = jax.random.normal(k2, (M, E), dtype=jnp.float32)
    proj_w = (jax.random.normal(k3, (E, D), dtype=jnp.float32)
              * (1.0 / jnp.sqrt(E)))
    proj_b = jax.random.normal(k4, (1, D), dtype=jnp.float32) * 0.02

    enc_out, lrn_out = model_forward(
        table_embeds, table_masks, learnable_embedding, proj_w, proj_b)
    jax.block_until_ready((enc_out, lrn_out))

    # numerical sanity check against pure-JAX reference
    enc_ref = _ref_encode(table_embeds, table_masks, proj_w, proj_b)
    lrn_ref = _ref_project(learnable_embedding, proj_w, proj_b)
    assert enc_out.shape == (B, D) and lrn_out.shape == (M, D)
    assert jnp.allclose(enc_out, enc_ref, atol=1e-4, rtol=1e-4)
    assert jnp.allclose(lrn_out, lrn_ref, atol=1e-4, rtol=1e-4)

    print("KERNEL_OK")
</pallas_src>

<mosaic_0001>
module attributes {stable_mosaic.version = 11 : i64} {
  func.func @_fused_kernel(%arg0: i32, %arg1: memref<10x40xf32, #tpu.memory_space<vmem>>, %arg2: memref<40x128xf32, #tpu.memory_space<vmem>>, %arg3: memref<128x128xf32, #tpu.memory_space<vmem>>, %arg4: memref<1x128xf32, #tpu.memory_space<vmem>>, %arg5: memref<10x128xf32, #tpu.memory_space<vmem>>) attributes {dimension_semantics = [#tpu.dimension_semantics<parallel>], iteration_bounds = array<i64: 2>, scalar_prefetch = 0 : i64, scratch_operands = 0 : i64, tpu.core_type = #tpu.core_type<tc>, window_params = [{pipeline_mode = #tpu.pipeline_mode<synchronous>, transform_indices = @transform_0, window_bounds = array<i64: 10, 40>}, {pipeline_mode = #tpu.pipeline_mode<synchronous>, transform_indices = @transform_1, window_bounds = array<i64: 40, 128>}, {transform_indices = @transform_2, window_bounds = array<i64: 128, 128>}, {transform_indices = @transform_3, window_bounds = array<i64: 1, 128>}, {transform_indices = @transform_4, window_bounds = array<i64: 10, 128>}]} {
    %c0 = arith.constant 0 : index
    %c0_0 = arith.constant 0 : index
    %0 = vector.load %arg1[%c0, %c0_0] : memref<10x40xf32, #tpu.memory_space<vmem>>, vector<10x40xf32>
    %c0_1 = arith.constant 0 : index
    %c0_2 = arith.constant 0 : index
    %1 = vector.load %arg2[%c0_1, %c0_2] : memref<40x128xf32, #tpu.memory_space<vmem>>, vector<40x128xf32>
    %cst = arith.constant dense<0.000000e+00> : vector<10x128xf32>
    %2 = tpu.matmul %0, %1, %cst {dimension_numbers = #tpu.dot_dimension_numbers<[1], [0], [0], [1], [0, 0, 1, 1], [], []>} : vector<10x40xf32>, vector<40x128xf32>, vector<10x128xf32> -> vector<10x128xf32>
    %c0_3 = arith.constant 0 : index
    %c0_4 = arith.constant 0 : index
    %3 = vector.load %arg3[%c0_3, %c0_4] : memref<128x128xf32, #tpu.memory_space<vmem>>, vector<128x128xf32>
    %cst_5 = arith.constant dense<0.000000e+00> : vector<10x128xf32>
    %4 = tpu.matmul %2, %3, %cst_5 {dimension_numbers = #tpu.dot_dimension_numbers<[1], [0], [0], [1], [0, 0, 1, 1], [], []>} : vector<10x128xf32>, vector<128x128xf32>, vector<10x128xf32> -> vector<10x128xf32>
    %c0_6 = arith.constant 0 : index
    %c0_7 = arith.constant 0 : index
    %5 = vector.load %arg4[%c0_6, %c0_7] : memref<1x128xf32, #tpu.memory_space<vmem>>, vector<1x128xf32>
    %6 = vector.broadcast %5 : vector<1x128xf32> to vector<10x128xf32>
    %7 = arith.addf %4, %6 : vector<10x128xf32>
    %c0_8 = arith.constant 0 : index
    %c0_9 = arith.constant 0 : index
    %8 = vector.load %arg5[%c0_8, %c0_9] : memref<10x128xf32, #tpu.memory_space<vmem>>, vector<10x128xf32>
    tpu.vector_store %arg5[%c0_8, %c0_9], %7 {strides = array<i32>} : memref<10x128xf32, #tpu.memory_space<vmem>>, vector<10x128xf32>,
    return
  }
  func.func @transform_0(%arg0: i32) -> (i32, i32) {
    %c0_i32 = arith.constant 0 : i32
    %c0_i32_0 = arith.constant 0 : i32
    %c0_i32_1 = arith.constant 0 : i32
    return %c0_i32, %c0_i32_0 : i32, i32
  }
  func.func @transform_1(%arg0: i32) -> (i32, i32) {
    %c0_i32 = arith.constant 0 : i32
    %c0_i32_0 = arith.constant 0 : i32
    %c0_i32_1 = arith.constant 0 : i32
    return %c0_i32, %c0_i32_0 : i32, i32
  }
  func.func @transform_2(%arg0: i32) -> (i32, i32) {
    %c0_i32 = arith.constant 0 : i32
    %c0_i32_0 = arith.constant 0 : i32
    return %c0_i32, %arg0 : i32, i32
  }
  func.func @transform_3(%arg0: i32) -> (i32, i32) {
    %c0_i32 = arith.constant 0 : i32
    %c0_i32_0 = arith.constant 0 : i32
    return %c0_i32, %arg0 : i32, i32
  }
  func.func @transform_4(%arg0: i32) -> (i32, i32) {
    %c0_i32 = arith.constant 0 : i32
    %c0_i32_0 = arith.constant 0 : i32
    return %c0_i32, %arg0 : i32, i32
  }
}

</mosaic_0001>

<llo_original>
// kernel: model_forward.1
$region0: #{model_forward.1}
  #allocation0 [shape = 'u32[]', space=smem, size = 0x4, offset = 0x4, fixed_abs, tag = 'smem constant byte address 0x4 - core index']
  #allocation1 [shape = 'u32[144,128]{1,0:T(1,128)}', space=vmem, size = 0x12000, scoped, tag = 'internal scratch']
  %s0 = inlined_call_operand.vmem [shape: f32[10,40], index: 0, kind: input, shape index: {}]
  %s1 = inlined_call_operand.vmem [shape: f32[40,128], index: 1, kind: input, shape index: {}]
  %s2 = inlined_call_operand.hbm [shape: f32[128,256], index: 2, kind: input, shape index: {}]
  %s3 = inlined_call_operand.vmem [shape: f32[1,256], index: 3, kind: input, shape index: {}]
  %s4 = inlined_call_operand.vmem [shape: f32[10,256], index: 4, kind: output, shape index: {}]
  %s5 = sld [smem:[#allocation0]]
  $region87: #{model_forward.1} parent=0
    _
  %s7 = ssub.s32 1, %s5
  %s8 = scalar_select 0, %s7, %s5
  $region1: #{model_forward.1} parent=0
    #allocation2 [shape = 'u8[131072]{0}', space=vmem, size = 0x20000, scoped, tag = 'input window, operand 2']
    #allocation3 [shape = 's32[2]{0}', space=sflag, size = 0x8, scoped, tag = 'scoped memory for model_forward.1']
    #allocation4 [shape = 'u8[16384]{0}', space=vmem, size = 0x4000, scoped, tag = 'output window, operand 0']
    %9 = vsyncpa [#allocation3], 0
    %s10 = scalar_lea.sflag [#allocation3], 1
    %11 = vsyncpa %s10, 0
    loop: start=0, step=1, limit=4
    $region2: #{model_forward.1} parent=1 // loop_pre_header
      _
    $region3: #{model_forward.1} parent=1 // loop_header
      %s13 = sphi 0, %s17
      %p14 = scmp.ge.s32.totalorder %s13, 4
      %s21 = sphi 0, %s21
      %s23 = sphi 0, %s21
      %s24 = sphi 0, %s23
      %s38 = sphi 0, %s24
      %s42 = sphi 0, %s42
      %s44 = sphi 0, %s42
      %s45 = sphi 0, %s44
      %s59 = sphi 0, %s45
      %s65 = sphi 0, %s67
      %s68 = sphi 0, %s65
      %s69 = sphi 0, %s68
      %s85 = sphi 0, %s69
      %s91 = sphi 0, %s93
      %s94 = sphi 0, %s91
      %s95 = sphi 0, %s94
      %s111 = sphi 0, %s95
      %s117 = sphi 0, %s119
      %s120 = sphi 0, %s117
      %s121 = sphi 0, %s120
      %s137 = sphi 0, %s121
    $region4: #{model_forward.1} parent=1 // loop_header_branch
      %16 = sbr.rel (%p14) target = $region8
    $region5: #{model_forward.1} parent=1 // loop_body
      %s18 = ssub.s32 %s13, 1
      %s19 = ssub.s32 %s13, 2
      %s20 = sadd.s32 %s13, 1
      %s22 = sadd.s32 %s21, 1
      %p25 = scmp.eq.s32.totalorder %s13, 1
      %p26 = scmp.ne.s32.totalorder %s21, %s23
      %p27 = scmp.eq.s32.totalorder %s13, 0
      %p28 = por %p26, %p27
      %p29 = scmp.ne.s32.totalorder %s21, %s23
      %p30 = scmp.eq.s32.totalorder %s18, 1
      %p31 = por %p29, %p30
      %p32 = scmp.ne.s32.totalorder %s23, %s24
      %p33 = scmp.eq.s32.totalorder %s18, 0
      %p34 = por %p32, %p33
      %p35 = scmp.ne.s32.totalorder %s23, %s24
      %p36 = scmp.eq.s32.totalorder %s19, 1
      %p37 = por %p35, %p36
      %p39 = scmp.ne.s32.totalorder %s24, %s38
      %p40 = scmp.eq.s32.totalorder %s19, 0
      %p41 = por %p39, %p40
      %s43 = sadd.s32 %s42, 1
      %p46 = scmp.eq.s32.totalorder %s13, 1
      %p47 = scmp.ne.s32.totalorder %s42, %s44
      %p48 = scmp.eq.s32.totalorder %s13, 0
      %p49 = por %p47, %p48
      %p50 = scmp.ne.s32.totalorder %s42, %s44
      %p51 = scmp.eq.s32.totalorder %s18, 1
      %p52 = por %p50, %p51
      %p53 = scmp.ne.s32.totalorder %s44, %s45
      %p54 = scmp.eq.s32.totalorder %s18, 0
      %p55 = por %p53, %p54
      %p56 = scmp.ne.s32.totalorder %s44, %s45
      %p57 = scmp.eq.s32.totalorder %s19, 1
      %p58 = por %p56, %p57
      %p60 = scmp.ne.s32.totalorder %s45, %s59
      %p61 = scmp.eq.s32.totalorder %s19, 0
      %p62 = por %p60, %p61
      %s63 = ssub.s32 %s13, %s20
      %p64 = scmp.eq.s32.totalorder %s63, 0
      %s66 = sadd.s32 %s65, 1
      %s67 = scalar_select %p64, %s65, %s66
      %p70 = pneg %p64
      %p71 = scmp.eq.s32.totalorder %s13, 1
      %p72 = por %p70, %p71
      %p73 = scmp.ne.s32.totalorder %s65, %s68
      %p74 = scmp.eq.s32.totalorder %s13, 0
      %p75 = por %p73, %p74
      %p76 = scmp.ne.s32.totalorder %s65, %s68
      %p77 = scmp.eq.s32.totalorder %s18, 1
      %p78 = por %p76, %p77
      %p79 = scmp.ne.s32.totalorder %s68, %s69
      %p80 = scmp.eq.s32.totalorder %s18, 0
      %p81 = por %p79, %p80
      %p82 = scmp.ne.s32.totalorder %s68, %s69
      %p83 = scmp.eq.s32.totalorder %s19, 1
      %p84 = por %p82, %p83
      %p86 = scmp.ne.s32.totalorder %s69, %s85
      %p87 = scmp.eq.s32.totalorder %s19, 0
      %p88 = por %p86, %p87
      %s89 = ssub.s32 %s13, %s20
      %p90 = scmp.eq.s32.totalorder %s89, 0
      %s92 = sadd.s32 %s91, 1
      %s93 = scalar_select %p90, %s91, %s92
      %p96 = pneg %p90
      %p97 = scmp.eq.s32.totalorder %s13, 1
      %p98 = por %p96, %p97
      %p99 = scmp.ne.s32.totalorder %s91, %s94
      %p100 = scmp.eq.s32.totalorder %s13, 0
      %p101 = por %p99, %p100
      %p102 = scmp.ne.s32.totalorder %s91, %s94
      %p103 = scmp.eq.s32.totalorder %s18, 1
      %p104 = por %p102, %p103
      %p105 = scmp.ne.s32.totalorder %s94, %s95
      %p106 = scmp.eq.s32.totalorder %s18, 0
      %p107 = por %p105, %p106
      %p108 = scmp.ne.s32.totalorder %s94, %s95
      %p109 = scmp.eq.s32.totalorder %s19, 1
      %p110 = por %p108, %p109
      %p112 = scmp.ne.s32.totalorder %s95, %s111
      %p113 = scmp.eq.s32.totalorder %s19, 0
      %p114 = por %p112, %p113
      %s115 = ssub.s32 %s13, %s20
      %p116 = scmp.eq.s32.totalorder %s115, 0
      %s118 = sadd.s32 %s117, 1
      %s119 = scalar_select %p116, %s117, %s118
      %p122 = pneg %p116
      %p123 = scmp.eq.s32.totalorder %s13, 1
      %p124 = por %p122, %p123
      %p125 = scmp.ne.s32.totalorder %s117, %s120
      %p126 = scmp.eq.s32.totalorder %s13, 0
      %p127 = por %p125, %p126
      %p128 = scmp.ne.s32.totalorder %s117, %s120
      %p129 = scmp.eq.s32.totalorder %s18, 1
      %p130 = por %p128, %p129
      %p131 = scmp.ne.s32.totalorder %s120, %s121
      %p132 = scmp.eq.s32.totalorder %s18, 0
      %p133 = por %p131, %p132
      %p134 = scmp.ne.s32.totalorder %s120, %s121
      %p135 = scmp.eq.s32.totalorder %s19, 1
      %p136 = por %p134, %p135
      %p138 = scmp.ne.s32.totalorder %s121, %s137
      %p139 = scmp.eq.s32.totalorder %s19, 0
      %p140 = por %p138, %p139
      %p141 = scmp.le.s32.totalorder 1, %s13
      %p142 = scmp.lt.s32.totalorder %s13, 3
      %p143 = pnand %p141, %p142
      %p144 = pneg %p143
      // Predicated region
      $region9: #{model_forward.1} parent=5 // pred_check
        _
      $region10: #{model_forward.1} parent=5 // pred_check_branch
        %146 = sbr.rel (%p143) target = $region12
      $region11: #{model_forward.1} parent=5 // pred_region
        %s147 = ssub.s32 %s13, 1
        // Predicated region
        $region13: #{model_forward.1} parent=11 // pred_check
          %p148 = pneg %p34
        $region14: #{model_forward.1} parent=11 // pred_check_branch
          %150 = sbr.rel (%p148) target = $region16
        $region15: #{model_forward.1} parent=11 // pred_region
          _
        $region16: #{model_forward.1} parent=11 // pred_fallthru
          _
        // Predicated region
        $region17: #{model_forward.1} parent=11 // pred_check
          %p151 = pneg %p55
        $region18: #{model_forward.1} parent=11 // pred_check_branch
          %153 = sbr.rel (%p151) target = $region20
        $region19: #{model_forward.1} parent=11 // pred_region
          _
        $region20: #{model_forward.1} parent=11 // pred_fallthru
          _
      $region12: #{model_forward.1} parent=5 // pred_fallthru
        _
      %p154 = scmp.lt.s32.totalorder %s13, 2
      // Predicated region
      $region21: #{model_forward.1} parent=5 // pred_check
        %p155 = pneg %p154
      $region22: #{model_forward.1} parent=5 // pred_check_branch
        %157 = sbr.rel (%p155) target = $region24
      $region23: #{model_forward.1} parent=5 // pred_region
        // Predicated region
        $region25: #{model_forward.1} parent=23 // pred_check
          %p158 = pneg %p75
        $region26: #{model_forward.1} parent=23 // pred_check_branch
          %160 = sbr.rel (%p158) target = $region28
        $region27: #{model_forward.1} parent=23 // pred_region
          %s161 = sand.u32 %s65, 1
          %s162 = scalar_lea.sflag [#allocation3], %s161
          %s163 = sand.u32 %s65, 1
          %s164 = smul.addr %s163, 128
          %s165 = scalar_lea.vmem [#allocation2], %s164
          %s167 = ssub.s32 2048, 2048
          %168 = vsyncadd %s162, %s167
          %s169 = smul.addr %s13, 128
          %s170 = scalar_lea.hbm %s2, %s169
          %s171 = sshll.u32 %s165, 4
          %s172 = int_to_ptr.vmem [resolvable:$true] %s171
          %177 = dma.hbm_to_vmem [thread:$0]  %s170, 2048, %s172, %s162, 256, 128, 8
        $region28: #{model_forward.1} parent=23 // pred_fallthru
          _
        // Predicated region
        $region29: #{model_forward.1} parent=23 // pred_check
          %p178 = pneg %p101
        $region30: #{model_forward.1} parent=23 // pred_check_branch
          %180 = sbr.rel (%p178) target = $region32
        $region31: #{model_forward.1} parent=23 // pred_region
          %p181 = scmp.lt.s32.totalorder %s13, 1
          %s182 = scalar_select %p181, %s13, 1
          %s183 = scalar_lea.vmem %s3, %s182
        $region32: #{model_forward.1} parent=23 // pred_fallthru
          _
      $region24: #{model_forward.1} parent=5 // pred_fallthru
        _
      %p184 = scmp.le.s32.totalorder 1, %s13
      %p185 = scmp.lt.s32.totalorder %s13, 3
      %p186 = pnand %p184, %p185
      %p187 = pneg %p186
      // Predicated region
      $region33: #{model_forward.1} parent=5 // pred_check
        _
      $region34: #{model_forward.1} parent=5 // pred_check_branch
        %189 = sbr.rel (%p186) target = $region36
      $region35: #{model_forward.1} parent=5 // pred_region
        %s190 = ssub.s32 %s13, 1
        %s191 = sand.u32 %s68, 1
        %s192 = scalar_lea.sflag [#allocation3], %s191
        %s193 = sand.u32 %s68, 1
        %s194 = smul.addr %s193, 128
        %s195 = scalar_lea.vmem [#allocation2], %s194
        // Predicated region
        $region37: #{model_forward.1} parent=35 // pred_check
          %p196 = pneg %p81
        $region38: #{model_forward.1} parent=35 // pred_check_branch
          %198 = sbr.rel (%p196) target = $region40
        $region39: #{model_forward.1} parent=35 // pred_region
          %199 = dma.done %s192, 2048
        $region40: #{model_forward.1} parent=35 // pred_fallthru
          _
        %p200 = pneg %p34
        %p201 = pneg %p31
        %p202 = pneg %p55
        %p203 = pneg %p52
        %s204 = sand.u32 %s68, 1
        %s205 = scalar_lea.sflag [#allocation3], %s204
        %s206 = sand.u32 %s68, 1
        %s207 = smul.addr %s206, 128
        %s208 = scalar_lea.vmem [#allocation2], %s207
        %p209 = pneg %p81
        %p210 = pneg %p78
        %p211 = scmp.lt.s32.totalorder %s18, 1
        %s212 = scalar_select %p211, %s18, 1
        %s213 = scalar_lea.vmem %s3, %s212
        %p214 = pneg %p107
        %p215 = pneg %p104
        %p216 = pneg %p133
        %p217 = pneg %p130
        %s218 = sand.u32 %s120, 1
        %s219 = sand.u32 %s120, 1
        %s220 = smul.addr %s219, 16
        %s221 = scalar_lea.vmem [#allocation4], %s220
        %p222 = scmp.lt.s32.totalorder %s18, 1
        %s223 = scalar_select %p222, %s18, 1
        %s224 = scalar_lea.vmem %s3, %s223
        %v225 = vld [vmem:[%s0] sm:$0xff]
        %v226 = vld [vmem:[%s0 + $0x8] sm:$0x3]
        %v227 = vld [vmem:[%s1] sm:$0xff]
        %v228 = vld [vmem:[%s1 + $0x8] sm:$0xff]
        %v229 = vld [vmem:[%s1 + $0x10] sm:$0xff]
        %v230 = vld [vmem:[%s1 + $0x18] sm:$0xff]
        %v231 = vld [vmem:[%s1 + $0x20] sm:$0xff]
        %vm232 = vcmask 326656
        %v234 = vsel %vm232, %v225, 0
        %v237 = vsel %vm232, %v226, 0
        %239 = vmatprep.subr.mxu0 0.0
        %240 = vmatpush1.msra.mxu0 0.0
        %241 = vmatprep.subr.mxu0 0.0
        %242 = vmatpush1.msra.mxu0 0.0
        %243 = vmatprep.subr.mxu0 0.0
        %244 = vmatpush1.msra.mxu0 0.0
        %245 = vmatprep.subr.mxu0 0.0
        %246 = vmatpush1.msra.mxu0 0.0
        %247 = vmatprep.subr.mxu0 0.0
        %248 = vmatpush1.msra.mxu0 0.0
        %249 = vmatprep.subr.mxu0 0.0
        %250 = vmatpush1.msra.mxu0 0.0
        %251 = vmatprep.subr.mxu0 0.0
        %252 = vmatpush1.msra.mxu0 0.0
        %253 = vmatprep.subr.mxu0 0.0
        %254 = vmatpush1.msra.mxu0 0.0
        %255 = vmatprep.subr.mxu0 0.0
        %256 = vmatpush1.msra.mxu0 0.0
        %257 = vmatprep.subr.mxu0 0.0
        %258 = vmatpush1.msra.mxu0 0.0
        %259 = vmatprep.subr.mxu0 0.0
        %260 = vmatpush1.msra.mxu0 0.0
        %261 = vmatprep.subr.mxu0 0.0
        %262 = vmatpush1.msra.mxu0 %v231
        %263 = vmatprep.subr.mxu0 0.0
        %264 = vmatpush1.msra.mxu0 %v230
        %265 = vmatprep.subr.mxu0 0.0
        %266 = vmatpush1.msra.mxu0 %v229
        %267 = vmatprep.subr.mxu0 0.0
        %268 = vmatpush1.msra.mxu0 %v228
        %269 = vmatprep.subr.mxu0 0.0
        %270 = vmatpush1.msra.mxu0 %v227
        %271 = vmatprep.subr.mxu0 0.0
        %272 = vmatpush2.msra.mxu0 0.0
        %273 = vmatprep.subr.mxu0 0.0
        %274 = vmatpush2.msra.mxu0 0.0
        %275 = vmatprep.subr.mxu0 0.0
        %276 = vmatpush2.msra.mxu0 0.0
        %277 = vmatprep.subr.mxu0 0.0
        %278 = vmatpush2.msra.mxu0 0.0
        %279 = vmatprep.subr.mxu0 0.0
        %280 = vmatpush2.msra.mxu0 0.0
        %281 = vmatprep.subr.mxu0 0.0
        %282 = vmatpush2.msra.mxu0 0.0
        %283 = vmatprep.subr.mxu0 0.0
        %284 = vmatpush2.msra.mxu0 0.0
        %285 = vmatprep.subr.mxu0 0.0
        %286 = vmatpush2.msra.mxu0 0.0
        %287 = vmatprep.subr.mxu0 0.0
        %288 = vmatpush2.msra.mxu0 0.0
        %289 = vmatprep.subr.mxu0 0.0
        %290 = vmatpush2.msra.mxu0 0.0
        %291 = vmatprep.subr.mxu0 0.0
        %292 = vmatpush2.msra.mxu0 0.0
        %293 = vmatprep.subr.mxu0 0.0
        %294 = vmatpush2.msra.mxu0 0.0
        %295 = vmatprep.subr.mxu0 0.0
        %296 = vmatpush2.msra.mxu0 0.0
        %297 = vmatprep.subr.mxu0 0.0
        %298 = vmatpush2.msra.mxu0 0.0
        %299 = vmatprep.subr.mxu0 0.0
        %300 = vmatpush2.msra.mxu0 0.0
        %301 = vmatprep.subr.mxu0 0.0
        %302 = vmatpush2.msra.mxu0 0.0
        %303 = vmatprep.mubr.f32.mxu0 0.0
        %304 = vmatmul.mubr.f32.gmra.mxu0 %v234
        %v305 = vpop.f32.mrf.mxu0
        %v306 = vadd.f32 0.0, %v305
        %v307 = vpop.f32.mrf.mxu0
        %308 = vmatprep.mubr.f32.mxu0 0.0
        %309 = vmatmul.mubr.f32.gmra.mxu0 %v237
        %v310 = vpop.f32.mrf.mxu0
        %v311 = vadd.f32 0.0, %v310
        %v312 = vpop.f32.mrf.mxu0
        %313 = vdwg.mxu0
        %v314 = vld [vmem:[%s195] sm:$0xff]
        %v315 = vld [vmem:[%s195 + $0x8] sm:$0xff]
        %v316 = vld [vmem:[%s195 + $0x10] sm:$0xff]
        %v317 = vld [vmem:[%s195 + $0x18] sm:$0xff]
        %v318 = vld [vmem:[%s195 + $0x20] sm:$0xff]
        %v319 = vld [vmem:[%s195 + $0x28] sm:$0xff]
        %v320 = vld [vmem:[%s195 + $0x30] sm:$0xff]
        %v321 = vld [vmem:[%s195 + $0x38] sm:$0xff]
        %v322 = vld [vmem:[%s195 + $0x40] sm:$0xff]
        %v323 = vld [vmem:[%s195 + $0x48] sm:$0xff]
        %v324 = vld [vmem:[%s195 + $0x50] sm:$0xff]
        %v325 = vld [vmem:[%s195 + $0x58] sm:$0xff]
        %v326 = vld [vmem:[%s195 + $0x60] sm:$0xff]
        %v327 = vld [vmem:[%s195 + $0x68] sm:$0xff]
        %v328 = vld [vmem:[%s195 + $0x70] sm:$0xff]
        %v329 = vld [vmem:[%s195 + $0x78] sm:$0xff]
        %v330 = vld [vmem:[%s224] sm:$0x1]
        %v332 = vlaneseq
        %v333 = vshrl.u32 %v332, 7
        %v334 = vsub.s32 0, %v333
        %v335 = vrot.slane %v330, %v334
        %337 = vmatprep.subr.mxu0 0.0
        %338 = vmatpush1.msra.mxu0 %v329
        %339 = vmatprep.subr.mxu0 0.0
        %340 = vmatpush1.msra.mxu0 %v328
        %341 = vmatprep.subr.mxu0 0.0
        %342 = vmatpush1.msra.mxu0 %v327
        %343 = vmatprep.subr.mxu0 0.0
        %344 = vmatpush1.msra.mxu0 %v326
        %345 = vmatprep.subr.mxu0 0.0
        %346 = vmatpush1.msra.mxu0 %v325
        %347 = vmatprep.subr.mxu0 0.0
        %348 = vmatpush1.msra.mxu0 %v324
        %349 = vmatprep.subr.mxu0 0.0
        %350 = vmatpush1.msra.mxu0 %v323
        %351 = vmatprep.subr.mxu0 0.0
        %352 = vmatpush1.msra.mxu0 %v322
        %353 = vmatprep.subr.mxu0 0.0
        %354 = vmatpush1.msra.mxu0 %v321
        %355 = vmatprep.subr.mxu0 0.0
        %356 = vmatpush1.msra.mxu0 %v320
        %357 = vmatprep.subr.mxu0 0.0
        %358 = vmatpush1.msra.mxu0 %v319
        %359 = vmatprep.subr.mxu0 0.0
        %360 = vmatpush1.msra.mxu0 %v318
        %361 = vmatprep.subr.mxu0 0.0
        %362 = vmatpush1.msra.mxu0 %v317
        %363 = vmatprep.subr.mxu0 0.0
        %364 = vmatpush1.msra.mxu0 %v316
        %365 = vmatprep.subr.mxu0 0.0
        %366 = vmatpush1.msra.mxu0 %v315
        %367 = vmatprep.subr.mxu0 0.0
        %368 = vmatpush1.msra.mxu0 %v314
        %369 = vmatprep.subr.mxu0 0.0
        %370 = vmatpush2.msra.mxu0 0.0
        %371 = vmatprep.subr.mxu0 0.0
        %372 = vmatpush2.msra.mxu0 0.0
        %373 = vmatprep.subr.mxu0 0.0
        %374 = vmatpush2.msra.mxu0 0.0
        %375 = vmatprep.subr.mxu0 0.0
        %376 = vmatpush2.msra.mxu0 0.0
        %377 = vmatprep.subr.mxu0 0.0
        %378 = vmatpush2.msra.mxu0 0.0
        %379 = vmatprep.subr.mxu0 0.0
        %380 = vmatpush2.msra.mxu0 0.0
        %381 = vmatprep.subr.mxu0 0.0
        %382 = vmatpush2.msra.mxu0 0.0
        %383 = vmatprep.subr.mxu0 0.0
        %384 = vmatpush2.msra.mxu0 0.0
        %385 = vmatprep.subr.mxu0 0.0
        %386 = vmatpush2.msra.mxu0 0.0
        %387 = vmatprep.subr.mxu0 0.0
        %388 = vmatpush2.msra.mxu0 0.0
        %389 = vmatprep.subr.mxu0 0.0
        %390 = vmatpush2.msra.mxu0 0.0
        %391 = vmatprep.subr.mxu0 0.0
        %392 = vmatpush2.msra.mxu0 0.0
        %393 = vmatprep.subr.mxu0 0.0
        %394 = vmatpush2.msra.mxu0 0.0
        %395 = vmatprep.subr.mxu0 0.0
        %396 = vmatpush2.msra.mxu0 0.0
        %397 = vmatprep.subr.mxu0 0.0
        %398 = vmatpush2.msra.mxu0 0.0
        %399 = vmatprep.subr.mxu0 0.0
        %400 = vmatpush2.msra.mxu0 0.0
        %401 = vmatprep.mubr.f32.mxu0 0.0
        %402 = vmatmul.mubr.f32.gmra.mxu0 %v306
        %v403 = vpop.f32.mrf.mxu0
        %v404 = vadd.f32 %v335, %v403
        %v405 = vpop.f32.mrf.mxu0
        %406 = vmatprep.mubr.f32.mxu0 0.0
        %407 = vmatmul.mubr.f32.gmra.mxu0 %v311
        %v408 = vpop.f32.mrf.mxu0
        %v409 = vadd.f32 %v335, %v408
        %v410 = vpop.f32.mrf.mxu0
        %411 = vdwg.mxu0
        %412 = vst [vmem:[%s221] sm:$0xff] %v404
        %413 = vst [vmem:[%s221 + $0x8] sm:$0x3] %v409
        %s414 = sand.u32 %s120, 1
        %s415 = sand.u32 %s120, 1
        %s416 = smul.addr %s415, 16
        %s417 = scalar_lea.vmem [#allocation4], %s416
        // Predicated region
        $region41: #{model_forward.1} parent=35 // pred_check
          %p418 = pneg %p130
        $region42: #{model_forward.1} parent=35 // pred_check_branch
          %420 = sbr.rel (%p418) target = $region44
        $region43: #{model_forward.1} parent=35 // pred_region
          %s421 = smul.addr %s18, 8
          %s422 = scalar_lea.vmem %s4, %s421
          // Predicated region
          $region45: #{model_forward.1} parent=43 // pred_check
            _
          $region46: #{model_forward.1} parent=43 // pred_check_branch
            %424 = sbr.rel (0) target = $region48
          $region47: #{model_forward.1} parent=43 // pred_region
            // Predicated region
            $region49: #{model_forward.1} parent=47 // pred_check
              _
            $region50: #{model_forward.1} parent=47 // pred_check_branch
              %426 = sbr.rel (0) target = $region52
            $region51: #{model_forward.1} parent=47 // pred_region
              // Predicated region
              $region64: #{model_forward.1} parent=51 // pred_check
                _
              $region65: #{model_forward.1} parent=51 // pred_check_branch
                %444 = sbr.rel (0) target = $region67
              $region66: #{model_forward.1} parent=51 // pred_region
                loop: start=0, step=1, limit=1
                $region68: #{model_forward.1} parent=66 // loop_pre_header
                  _
                $region69: #{model_forward.1} parent=66 // loop_header
                  %s446 = sphi 0, %s450
                  %p447 = scmp.ge.s32.totalorder %s446, 1
                  %s451 = sphi %s417, %s417
                  %s452 = sphi %s422, %s422
                $region70: #{model_forward.1} parent=66 // loop_header_branch
                  %449 = sbr.rel (%p447) target = $region74
                $region71: #{model_forward.1} parent=66 // loop_body
                  %v453 = vld [vmem:[%s451] sm:$0xff]
                  %454 = vst [vmem:[%s452] sm:$0xff] %v453
                  %v455 = vld [vmem:[%s451 + $0x8] sm:$0xff]
                  %456 = vst [vmem:[%s452 + $0x10] sm:$0xff] %v455
                $region72: #{model_forward.1} parent=66 // loop_footer
                  %s450 = sadd.s32 1, %s446
                $region73: #{model_forward.1} parent=66 // loop_footer_branch
                  %445 = sbr.rel target = $region69
                $region74: #{model_forward.1} parent=66 // loop_exit
                  _
              $region67: #{model_forward.1} parent=51 // pred_fallthru
                _
              // Predicated region
              $region75: #{model_forward.1} parent=51 // pred_check
                _
              $region76: #{model_forward.1} parent=51 // pred_check_branch
                %458 = sbr.rel target = $region78
              $region77: #{model_forward.1} parent=51 // pred_region
                _
              $region78: #{model_forward.1} parent=51 // pred_fallthru
                _
            $region52: #{model_forward.1} parent=47 // pred_fallthru
              _
            // Predicated region
            $region53: #{model_forward.1} parent=47 // pred_check
              _
            $region54: #{model_forward.1} parent=47 // pred_check_branch
              %428 = sbr.rel target = $region56
            $region55: #{model_forward.1} parent=47 // pred_region
              %s430 = ssub.s32 256, 1
              loop: start=0, step=1, limit=1
              $region57: #{model_forward.1} parent=55 // loop_pre_header
                _
              $region58: #{model_forward.1} parent=55 // loop_header
                %s432 = sphi 0, %s436
                %p433 = scmp.ge.s32.totalorder %s432, 1
                %s437 = sphi %s417, %s417
                %s438 = sphi %s422, %s422
              $region59: #{model_forward.1} parent=55 // loop_header_branch
                %435 = sbr.rel (%p433) target = $region63
              $region60: #{model_forward.1} parent=55 // loop_body
                %v439 = vld [vmem:[%s437] sm:%s430]
                %440 = vst [vmem:[%s438] sm:%s430] %v439
                %v441 = vld [vmem:[%s437 + $0x8] sm:%s430]
                %442 = vst [vmem:[%s438 + $0x10] sm:%s430] %v441
              $region61: #{model_forward.1} parent=55 // loop_footer
                %s436 = sadd.s32 1, %s432
              $region62: #{model_forward.1} parent=55 // loop_footer_branch
                %431 = sbr.rel target = $region58
              $region63: #{model_forward.1} parent=55 // loop_exit
                _
            $region56: #{model_forward.1} parent=47 // pred_fallthru
              _
          $region48: #{model_forward.1} parent=43 // pred_fallthru
            _
          %459 = vnop
        $region44: #{model_forward.1} parent=35 // pred_fallthru
          _
      $region36: #{model_forward.1} parent=5 // pred_fallthru
        _
      %p460 = scmp.le.s32.totalorder 2, %s13
      // Predicated region
      $region79: #{model_forward.1} parent=5 // pred_check
        %p461 = pneg %p460
      $region80: #{model_forward.1} parent=5 // pred_check_branch
        %463 = sbr.rel (%p461) target = $region82
      $region81: #{model_forward.1} parent=5 // pred_region
        %s464 = ssub.s32 %s13, 2
        // Predicated region
        $region83: #{model_forward.1} parent=81 // pred_check
          %p465 = pneg %p136
        $region84: #{model_forward.1} parent=81 // pred_check_branch
          %467 = sbr.rel (%p465) target = $region86
        $region85: #{model_forward.1} parent=81 // pred_region
          %s468 = sand.u32 %s121, 1
          %s469 = sand.u32 %s121, 1
          %s470 = smul.addr %s469, 16
          %s471 = scalar_lea.vmem [#allocation4], %s470
        $region86: #{model_forward.1} parent=81 // pred_fallthru
          _
      $region82: #{model_forward.1} parent=5 // pred_fallthru
        _
    $region6: #{model_forward.1} parent=1 // loop_footer
      %s17 = sadd.s32 1, %s13
    $region7: #{model_forward.1} parent=1 // loop_footer_branch
      %12 = sbr.rel target = $region3
    $region8: #{model_forward.1} parent=1 // loop_exit
      _
    %472 = vsyncpa [#allocation3], 1
    %s473 = scalar_lea.sflag [#allocation3], 1
    %474 = vsyncpa %s473, 1

</llo_original>
